<compile_context>
chip_gen: v6e
topology: v6e:2x2x1
jax: 0.10.0
libtpu: 0.0.40
codegen_flags: <defaults>
</compile_context>

<pallas_src>
import math

import jax
import jax.numpy as jnp
from jax import lax
from jax.experimental import pallas as pl
from jax.experimental.pallas import tpu as pltpu


def _morlet_kernel(x_ref, col_ref, row_ref, o_ref, acc_ref):
    """One grid step = (channel c, output-column tile ti, tau tile ki).

    x_ref   : (1, B, TK)  bf16  signal chunk x[c, :, k0:k0+TK]
    col_ref : (1, 3, TN)  f32   per-output-column vectors [cos p, sin p, g_t]
    row_ref : (1, TK, 6)  f32   per-tau vectors
                                [a*cos q, a*sin q, a*cos q2, a*sin q2, g_tau, g_tau2]
                                (the *2 variants bake in the mod-L wrap)
    o_ref   : (1, B, TN)  out_dtype
    acc_ref : (B, TN)     f32   K accumulator (scratch, persists across ki)
    """
    ki = pl.program_id(2)

    @pl.when(ki == 0)
    def _init():
        acc_ref[...] = jnp.zeros_like(acc_ref)

    tk = x_ref.shape[2]
    tn = o_ref.shape[2]
    t0 = pl.program_id(1) * tn   # global output-column (t) offset of this tile
    k0 = ki * tk                 # global tau offset of this tile

    # wrap <=> (t - tau) < 0  <=>  (j - r) < (k0 - t0)
    j = lax.broadcasted_iota(jnp.int32, (tk, tn), 1)
    r = lax.broadcasted_iota(jnp.int32, (tk, tn), 0)
    wrap = (j - r) < (k0 - t0)

    # Column-wise ingredients (broadcast along rows / sublanes).
    pc = col_ref[0, 0:1, :]          # (1, TN)  cos(omega*step*t)
    ps = col_ref[0, 1:2, :]          # (1, TN)  sin(omega*step*t)
    gt = col_ref[0, 2:3, :]          # (1, TN)  f_b*step*t
    # Row-wise ingredients (broadcast along columns / lanes).
    qc = row_ref[0, :, 0:1]          # (TK, 1)
    qs = row_ref[0, :, 1:2]
    qc2 = row_ref[0, :, 2:3]
    qs2 = row_ref[0, :, 3:4]
    gk = row_ref[0, :, 4:5]
    gk2 = row_ref[0, :, 5:6]

    # Gaussian envelope exp(-(f_b*n)^2), n = -1 + 2*((t - tau) mod L)/(L - 1).
    g = gt - jnp.where(wrap, gk2, gk)
    env = jnp.exp(-(g * g))
    # Oscillation  (f_b/sqrt(pi)) * cos(2*pi*f_c*n)  via angle addition
    # (no in-kernel cos; amp is folded into the q vectors).
    osc = pc * jnp.where(wrap, qc2, qc) + ps * jnp.where(wrap, qs2, qs)
    w_tile = (env * osc).astype(x_ref.dtype)     # (TK, TN) circulant tile, bf16

    acc_ref[...] += jnp.dot(x_ref[0], w_tile, preferred_element_type=jnp.float32)

    @pl.when(ki == pl.num_programs(2) - 1)
    def _finalize():
        o_ref[0] = acc_ref[...].astype(o_ref.dtype)


def _vmem_capacity_bytes():
    try:
        return int(pltpu.get_tpu_info().vmem_capacity_bytes)
    except Exception:
        return 64 * 1024 * 1024   # conservative default = v7x per-TC VMEM


def _step_vmem_bytes(B, tk, tn, out_itemsize):
    in_bufs = 2 * (B * tk * 2 + 3 * tn * 4 + tk * 6 * 4)   # double-buffered inputs
    out_bufs = 2 * (B * tn * out_itemsize)
    acc = B * tn * 4
    temps = 8 * tk * tn * 4   # construction temporaries (iotas/mask/env/osc/tile)
    return in_bufs + out_bufs + acc + temps


def _choose_tiles(B, L, out_itemsize, budget_bytes):
    """Lane-dense (multiple-of-128, prefer >=256) tiles that fit the VMEM budget."""
    if L % 128 != 0:
        # Full-extent tiles; fine for small / odd L (the toy shape).
        # TODO(synk): for huge L not a multiple of 128, zero-pad L to a multiple
        # of 128 in the wrapper (extra taus multiply x==0) so tiling stays bounded.
        return L, L
    cands = [c for c in (1024, 512, 256, 128) if L % c == 0]
    for tk in cands:
        for tn in cands:
            if _step_vmem_bytes(B, tk, tn, out_itemsize) <= budget_bytes:
                return tk, tn
    return 128, 128


def morlet_wavelet_filter(x, f_b, f_c, *, out_dtype=jnp.bfloat16):
    """x: (B, L, C); f_b, f_c: (C,)  ->  (B, L, C) in out_dtype."""
    B, L, C = x.shape
    f_b = f_b.astype(jnp.float32).reshape(C)
    f_c = f_c.astype(jnp.float32).reshape(C)

    # --- O(C*L) wrapper precompute (the only transcendentals outside exp) ---
    step = 2.0 / (L - 1) if L > 1 else 0.0              # linspace(-1, 1, L) spacing
    idx = jnp.arange(L, dtype=jnp.float32)               # used for both t and tau
    amp = f_b * jnp.float32(1.0 / math.sqrt(math.pi))    # (C,)
    omega = jnp.float32(2.0 * math.pi) * f_c              # (C,)

    # Per-output-column (t) vectors: p[t] = omega*step*t, g_t = f_b*step*t.
    p = omega[:, None] * (step * idx)[None, :]
    col = jnp.stack(
        [jnp.cos(p), jnp.sin(p), f_b[:, None] * (step * idx)[None, :]], axis=1
    ).astype(jnp.float32)                                 # (C, 3, L)

    # Per-tau vectors; q covers the un-wrapped case, q2 the wrapped (mod L) case:
    #   angle(t,tau) = omega*n = p[t] - q[tau]   (no wrap)
    #                = p[t] - q2[tau]            (wrap: tau > t)
    q = omega[:, None] * (step * idx + 1.0)[None, :]
    q2 = omega[:, None] * (step * (idx - L) + 1.0)[None, :]
    gk = f_b[:, None] * (step * idx + 1.0)[None, :]
    gk2 = f_b[:, None] * (step * (idx - L) + 1.0)[None, :]
    row = jnp.stack(
        [amp[:, None] * jnp.cos(q), amp[:, None] * jnp.sin(q),
         amp[:, None] * jnp.cos(q2), amp[:, None] * jnp.sin(q2),
         gk, gk2],
        axis=-1,
    ).astype(jnp.float32)                                 # (C, L, 6)

    # bf16 x for the MXU (cast fuses with the unavoidable interface transpose).
    x_cbl = jnp.transpose(x, (2, 0, 1)).astype(jnp.bfloat16)   # (C, B, L)

    out_itemsize = jnp.dtype(out_dtype).itemsize
    cap = _vmem_capacity_bytes()
    tk, tn = _choose_tiles(B, L, out_itemsize, budget_bytes=cap // 4)
    grid = (C, L // tn, L // tk)   # (channel, t tiles, tau tiles); tau innermost

    est = _step_vmem_bytes(B, tk, tn, out_itemsize)
    vmem_limit = int(min(max(2 * est, 32 * 1024 * 1024), (cap * 3) // 4))

    out_cbl = pl.pallas_call(
        _morlet_kernel,
        out_shape=jax.ShapeDtypeStruct((C, B, L), out_dtype),
        grid_spec=pltpu.PrefetchScalarGridSpec(
            num_scalar_prefetch=0,
            grid=grid,
            in_specs=[
                pl.BlockSpec((1, B, tk), lambda c, ti, ki: (c, 0, ki)),
                pl.BlockSpec((1, 3, tn), lambda c, ti, ki: (c, 0, ti)),
                pl.BlockSpec((1, tk, 6), lambda c, ti, ki: (c, ki, 0)),
            ],
            out_specs=pl.BlockSpec((1, B, tn), lambda c, ti, ki: (c, 0, ti)),
            scratch_shapes=[pltpu.VMEM((B, tn), jnp.float32)],
        ),
        compiler_params=pltpu.CompilerParams(
            dimension_semantics=("parallel", "parallel", "arbitrary"),
            vmem_limit_bytes=vmem_limit,
        ),
    )(x_cbl, col, row)

    return jnp.transpose(out_cbl, (1, 2, 0))              # (B, L, C)


def _reference_fft(x, f_b, f_c):
    """Pure-JAX replica of the PyTorch forward (FFT-based), for verification."""
    B, L, C = x.shape
    n = jnp.linspace(-1.0, 1.0, L)
    fb = f_b[:, None]
    fc = f_c[:, None]
    env = fb / jnp.sqrt(jnp.float32(math.pi)) * jnp.exp(-(fb ** 2) * (n[None, :] ** 2))
    wavelet = env * jnp.exp(1j * 2.0 * math.pi * fc * n[None, :])       # (C, L)
    x_bcl = jnp.transpose(x, (0, 2, 1))                                 # (B, C, L)
    x_fft = jnp.fft.fft(x_bcl, axis=-1)
    w_fft = jnp.fft.fft(wavelet, axis=-1)[None, :, :]
    y = jnp.real(jnp.fft.ifft(x_fft * w_fft, axis=-1))
    return jnp.transpose(y, (0, 2, 1))                                  # (B, L, C)


if __name__ == "__main__":
    # Small shapes consistent with the module: batch=2, length(in_dim)=16, scale=4.
    # Note (review #10): at B=2 the measurement is pure fixed overhead; realistic
    # throughput requires batching many signals so B approaches the MXU height.
    B, L, C = 2, 16, 4
    Morlet_f_b, Morlet_f_c = 1.0, 1.0

    key = jax.random.PRNGKey(0)
    kx, kb, kc = jax.random.split(key, 3)

    x = jax.random.normal(kx, (B, L, C), dtype=jnp.float32)
    # nn.init.normal_(f_b, mean=Morlet_f_b, std=1.0) — deterministic synthetic init
    f_b = Morlet_f_b + jax.random.normal(kb, (C,), dtype=jnp.float32)
    f_c = Morlet_f_c + jax.random.normal(kc, (C,), dtype=jnp.float32)

    y = morlet_wavelet_filter(x, f_b, f_c)
    y = jax.block_until_ready(y)

    y_ref = _reference_fft(x, f_b, f_c)
    assert y.shape == (B, L, C)
    # bf16 MXU inputs + bf16 output (f32 accumulation) vs exact f32 FFT reference.
    err = float(jnp.max(jnp.abs(y.astype(jnp.float32) - y_ref)))
    scale = float(jnp.max(jnp.abs(y_ref)))
    assert err <= 3e-2 * (scale + 1.0), f"mismatch vs FFT reference: err={err}, scale={scale}"

    print("KERNEL_OK")
</pallas_src>

<mosaic_0001>
module attributes {stable_mosaic.version = 11 : i64} {
  func.func @_morlet_kernel(%arg0: i32, %arg1: i32, %arg2: i32, %arg3: memref<1x2x16xbf16, #tpu.memory_space<vmem>>, %arg4: memref<1x3x16xf32, #tpu.memory_space<vmem>>, %arg5: memref<1x16x6xf32, #tpu.memory_space<vmem>>, %arg6: memref<1x2x16xbf16, #tpu.memory_space<vmem>>, %arg7: memref<2x16xf32, #tpu.memory_space<vmem>>) attributes {dimension_semantics = [#tpu.dimension_semantics<parallel>, #tpu.dimension_semantics<parallel>, #tpu.dimension_semantics<arbitrary>], iteration_bounds = array<i64: 4, 1, 1>, scalar_prefetch = 0 : i64, scratch_operands = 1 : i64, tpu.core_type = #tpu.core_type<tc>, window_params = [{transform_indices = @transform_0, window_bounds = array<i64: 1, 2, 16>}, {transform_indices = @transform_1, window_bounds = array<i64: 1, 3, 16>}, {transform_indices = @transform_2, window_bounds = array<i64: 1, 16, 6>}, {transform_indices = @transform_3, window_bounds = array<i64: 1, 2, 16>}]} {
    %c0_i32 = arith.constant 0 : i32
    %0 = arith.cmpi eq, %arg2, %c0_i32 : i32
    %1 = arith.extui %0 : i1 to i32
    %c0_i32_0 = arith.constant 0 : i32
    %2 = arith.cmpi ne, %1, %c0_i32_0 : i32
    scf.if %2 {
      %cst_33 = arith.constant 0.000000e+00 : f32
      %66 = vector.broadcast %cst_33 : f32 to vector<2x16xf32>
      %c0_34 = arith.constant 0 : index
      %c0_35 = arith.constant 0 : index
      %67 = vector.load %arg7[%c0_34, %c0_35] : memref<2x16xf32, #tpu.memory_space<vmem>>, vector<2x16xf32>
      tpu.vector_store %arg7[%c0_34, %c0_35], %66 {strides = array<i32>} : memref<2x16xf32, #tpu.memory_space<vmem>>, vector<2x16xf32>,
    } else {
    }
    %c16_i32 = arith.constant 16 : i32
    %3 = arith.muli %arg1, %c16_i32 : i32
    %c16_i32_1 = arith.constant 16 : i32
    %4 = arith.muli %arg2, %c16_i32_1 : i32
    %5 = tpu.iota {dimensions = array<i32: 1>} : vector<16x16xi32>
    %6 = tpu.iota {dimensions = array<i32: 0>} : vector<16x16xi32>
    %7 = arith.subi %5, %6 : vector<16x16xi32>
    %8 = arith.subi %4, %3 : i32
    %9 = vector.broadcast %8 : i32 to vector<16x16xi32>
    %10 = arith.cmpi slt, %7, %9 : vector<16x16xi32>
    %c0 = arith.constant 0 : index
    %c0_2 = arith.constant 0 : index
    %c0_3 = arith.constant 0 : index
    %11 = vector.load %arg4[%c0, %c0_2, %c0_3] : memref<1x3x16xf32, #tpu.memory_space<vmem>>, vector<1x1x16xf32>
    %12 = vector.shape_cast %11 : vector<1x1x16xf32> to vector<1x16xf32>
    %c0_4 = arith.constant 0 : index
    %c1 = arith.constant 1 : index
    %c0_5 = arith.constant 0 : index
    %13 = vector.load %arg4[%c0_4, %c1, %c0_5] : memref<1x3x16xf32, #tpu.memory_space<vmem>>, vector<1x1x16xf32>
    %14 = vector.shape_cast %13 : vector<1x1x16xf32> to vector<1x16xf32>
    %c0_6 = arith.constant 0 : index
    %c2 = arith.constant 2 : index
    %c0_7 = arith.constant 0 : index
    %15 = vector.load %arg4[%c0_6, %c2, %c0_7] : memref<1x3x16xf32, #tpu.memory_space<vmem>>, vector<1x1x16xf32>
    %16 = vector.shape_cast %15 : vector<1x1x16xf32> to vector<1x16xf32>
    %c0_8 = arith.constant 0 : index
    %c0_9 = arith.constant 0 : index
    %c0_10 = arith.constant 0 : index
    %17 = vector.load %arg5[%c0_8, %c0_9, %c0_10] : memref<1x16x6xf32, #tpu.memory_space<vmem>>, vector<1x16x1xf32>
    %18 = vector.shape_cast %17 : vector<1x16x1xf32> to vector<16x1xf32>
    %c0_11 = arith.constant 0 : index
    %c0_12 = arith.constant 0 : index
    %c1_13 = arith.constant 1 : index
    %19 = vector.load %arg5[%c0_11, %c0_12, %c1_13] : memref<1x16x6xf32, #tpu.memory_space<vmem>>, vector<1x16x1xf32>
    %20 = vector.shape_cast %19 : vector<1x16x1xf32> to vector<16x1xf32>
    %c0_14 = arith.constant 0 : index
    %c0_15 = arith.constant 0 : index
    %c2_16 = arith.constant 2 : index
    %21 = vector.load %arg5[%c0_14, %c0_15, %c2_16] : memref<1x16x6xf32, #tpu.memory_space<vmem>>, vector<1x16x1xf32>
    %22 = vector.shape_cast %21 : vector<1x16x1xf32> to vector<16x1xf32>
    %c0_17 = arith.constant 0 : index
    %c0_18 = arith.constant 0 : index
    %c3 = arith.constant 3 : index
    %23 = vector.load %arg5[%c0_17, %c0_18, %c3] : memref<1x16x6xf32, #tpu.memory_space<vmem>>, vector<1x16x1xf32>
    %24 = vector.shape_cast %23 : vector<1x16x1xf32> to vector<16x1xf32>
    %c0_19 = arith.constant 0 : index
    %c0_20 = arith.constant 0 : index
    %c4 = arith.constant 4 : index
    %25 = vector.load %arg5[%c0_19, %c0_20, %c4] : memref<1x16x6xf32, #tpu.memory_space<vmem>>, vector<1x16x1xf32>
    %26 = vector.shape_cast %25 : vector<1x16x1xf32> to vector<16x1xf32>
    %c0_21 = arith.constant 0 : index
    %c0_22 = arith.constant 0 : index
    %c5 = arith.constant 5 : index
    %27 = vector.load %arg5[%c0_21, %c0_22, %c5] : memref<1x16x6xf32, #tpu.memory_space<vmem>>, vector<1x16x1xf32>
    %28 = vector.shape_cast %27 : vector<1x16x1xf32> to vector<16x1xf32>
    %29 = vector.shape_cast %28 : vector<16x1xf32> to vector<16x1xf32>
    %30 = vector.broadcast %29 : vector<16x1xf32> to vector<16x16xf32>
    %31 = vector.shape_cast %26 : vector<16x1xf32> to vector<16x1xf32>
    %32 = vector.broadcast %31 : vector<16x1xf32> to vector<16x16xf32>
    %33 = arith.select %10, %30, %32 : vector<16x16xi1>, vector<16x16xf32>
    %34 = vector.broadcast %16 : vector<1x16xf32> to vector<16x16xf32>
    %35 = arith.subf %34, %33 : vector<16x16xf32>
    %36 = arith.mulf %35, %35 : vector<16x16xf32>
    %cst = arith.constant 0.000000e+00 : f32
    %37 = vector.broadcast %cst : f32 to vector<16x16xf32>
    %38 = arith.subf %37, %36 : vector<16x16xf32>
    %39 = math.exp %38 : vector<16x16xf32>
    %40 = vector.shape_cast %22 : vector<16x1xf32> to vector<16x1xf32>
    %41 = vector.broadcast %40 : vector<16x1xf32> to vector<16x16xf32>
    %42 = vector.shape_cast %18 : vector<16x1xf32> to vector<16x1xf32>
    %43 = vector.broadcast %42 : vector<16x1xf32> to vector<16x16xf32>
    %44 = arith.select %10, %41, %43 : vector<16x16xi1>, vector<16x16xf32>
    %45 = vector.broadcast %12 : vector<1x16xf32> to vector<16x16xf32>
    %46 = arith.mulf %45, %44 : vector<16x16xf32>
    %47 = vector.shape_cast %24 : vector<16x1xf32> to vector<16x1xf32>
    %48 = vector.broadcast %47 : vector<16x1xf32> to vector<16x16xf32>
    %49 = vector.shape_cast %20 : vector<16x1xf32> to vector<16x1xf32>
    %50 = vector.broadcast %49 : vector<16x1xf32> to vector<16x16xf32>
    %51 = arith.select %10, %48, %50 : vector<16x16xi1>, vector<16x16xf32>
    %52 = vector.broadcast %14 : vector<1x16xf32> to vector<16x16xf32>
    %53 = arith.mulf %52, %51 : vector<16x16xf32>
    %54 = arith.addf %46, %53 : vector<16x16xf32>
    %55 = arith.mulf %39, %54 : vector<16x16xf32>
    %56 = arith.truncf %55 : vector<16x16xf32> to vector<16x16xbf16>
    %c0_23 = arith.constant 0 : index
    %c0_24 = arith.constant 0 : index
    %57 = vector.load %arg7[%c0_23, %c0_24] : memref<2x16xf32, #tpu.memory_space<vmem>>, vector<2x16xf32>
    %c0_25 = arith.constant 0 : index
    %c0_26 = arith.constant 0 : index
    %c0_27 = arith.constant 0 : index
    %58 = vector.load %arg3[%c0_25, %c0_26, %c0_27] : memref<1x2x16xbf16, #tpu.memory_space<vmem>>, vector<1x2x16xbf16>
    %59 = vector.shape_cast %58 : vector<1x2x16xbf16> to vector<2x16xbf16>
    %cst_28 = arith.constant dense<0.000000e+00> : vector<2x16xf32>
    %60 = tpu.matmul %59, %56, %cst_28 {dimension_numbers = #tpu.dot_dimension_numbers<[1], [0], [0], [1], [0, 0, 1, 1], [], []>} : vector<2x16xbf16>, vector<16x16xbf16>, vector<2x16xf32> -> vector<2x16xf32>
    %61 = arith.addf %57, %60 : vector<2x16xf32>
    %c0_29 = arith.constant 0 : index
    %c0_30 = arith.constant 0 : index
    %62 = vector.load %arg7[%c0_29, %c0_30] : memref<2x16xf32, #tpu.memory_space<vmem>>, vector<2x16xf32>
    tpu.vector_store %arg7[%c0_29, %c0_30], %61 {strides = array<i32>} : memref<2x16xf32, #tpu.memory_space<vmem>>, vector<2x16xf32>,
    %c0_i32_31 = arith.constant 0 : i32
    %63 = arith.cmpi eq, %arg2, %c0_i32_31 : i32
    %64 = arith.extui %63 : i1 to i32
    %c0_i32_32 = arith.constant 0 : i32
    %65 = arith.cmpi ne, %64, %c0_i32_32 : i32
    scf.if %65 {
      %c0_33 = arith.constant 0 : index
      %c0_34 = arith.constant 0 : index
      %66 = vector.load %arg7[%c0_33, %c0_34] : memref<2x16xf32, #tpu.memory_space<vmem>>, vector<2x16xf32>
      %67 = arith.truncf %66 : vector<2x16xf32> to vector<2x16xbf16>
      %c0_35 = arith.constant 0 : index
      %c0_36 = arith.constant 0 : index
      %c0_37 = arith.constant 0 : index
      %68 = vector.load %arg6[%c0_35, %c0_36, %c0_37] : memref<1x2x16xbf16, #tpu.memory_space<vmem>>, vector<1x2x16xbf16>
      %69 = vector.shape_cast %68 : vector<1x2x16xbf16> to vector<2x16xbf16>
      %70 = vector.shape_cast %67 : vector<2x16xbf16> to vector<1x2x16xbf16>
      tpu.vector_store %arg6[%c0_35, %c0_36, %c0_37], %70 {strides = array<i32>} : memref<1x2x16xbf16, #tpu.memory_space<vmem>>, vector<1x2x16xbf16>,
    } else {
    }
    return
  }
  func.func @transform_0(%arg0: i32, %arg1: i32, %arg2: i32) -> (i32, i32, i32) {
    %c0_i32 = arith.constant 0 : i32
    %c0_i32_0 = arith.constant 0 : i32
    return %arg0, %c0_i32, %arg2 : i32, i32, i32
  }
  func.func @transform_1(%arg0: i32, %arg1: i32, %arg2: i32) -> (i32, i32, i32) {
    %c0_i32 = arith.constant 0 : i32
    %c0_i32_0 = arith.constant 0 : i32
    return %arg0, %c0_i32, %arg1 : i32, i32, i32
  }
  func.func @transform_2(%arg0: i32, %arg1: i32, %arg2: i32) -> (i32, i32, i32) {
    %c0_i32 = arith.constant 0 : i32
    %c0_i32_0 = arith.constant 0 : i32
    return %arg0, %arg2, %c0_i32 : i32, i32, i32
  }
  func.func @transform_3(%arg0: i32, %arg1: i32, %arg2: i32) -> (i32, i32, i32) {
    %c0_i32 = arith.constant 0 : i32
    %c0_i32_0 = arith.constant 0 : i32
    return %arg0, %c0_i32, %arg1 : i32, i32, i32
  }
}

</mosaic_0001>

<llo_original>
// kernel: tpu_custom_call.1
$region0: #{tpu_custom_call.1}
  #allocation0 [shape = 'u32[]', space=smem, size = 0x4, offset = 0x4, fixed_abs, tag = 'smem constant byte address 0x4 - core index']
  #allocation1 [shape = 'u32[144,128]{1,0:T(1,128)}', space=vmem, size = 0x12000, scoped, tag = 'internal scratch']
  #allocation2 [shape = 'f32[2,16]{1,0:T(2,128)}', space=vmem, size = 0x400, scoped, tag = 'scratch operand']
  %s0 = inlined_call_operand.vmem [shape: bf16[4,2,16], index: 0, kind: input, shape index: {}]
  %s1 = inlined_call_operand.vmem [shape: f32[4,3,16], index: 1, kind: input, shape index: {}]
  %s2 = inlined_call_operand.vmem [shape: f32[4,16,6], index: 2, kind: input, shape index: {}]
  %s3 = inlined_call_operand.hbm [shape: bf16[4,2,16], index: 3, kind: output, shape index: {}]
  %s4 = sld [smem:[#allocation0]]
  $region53: #{tpu_custom_call.1} parent=0
    _
  %s6 = ssub.s32 1, %s4
  %s7 = scalar_select 0, %s6, %s4
  $region1: #{tpu_custom_call.1} parent=0
    #allocation3 [shape = 'u8[1024]{0}', space=vmem, size = 0x400, scoped, tag = 'output window, operand 0']
    #allocation4 [shape = 's32[2]{0}', space=sflag, size = 0x8, scoped, tag = 'scoped memory for tpu_custom_call.1']
    %8 = vsyncpa [#allocation4], 0
    %s9 = scalar_lea.sflag [#allocation4], 1
    %10 = vsyncpa %s9, 0
    loop: start=0, step=1, limit=6
    $region2: #{tpu_custom_call.1} parent=1 // loop_pre_header
      _
    $region3: #{tpu_custom_call.1} parent=1 // loop_header
      %s12 = sphi 0, %s16
      %p13 = scmp.ge.s32.totalorder %s12, 6
      %s19 = sphi 0, %s38
      %s20 = sphi 0, %s34
      %s21 = sphi 0, %s30
      %s22 = sphi 0, %s19
      %s23 = sphi 0, %s20
      %s24 = sphi 0, %s21
      %s25 = sphi 0, %s22
      %s26 = sphi 0, %s23
      %s27 = sphi 0, %s24
      %s43 = sphi 0, %s45
      %s46 = sphi 0, %s43
      %s47 = sphi 0, %s46
      %s63 = sphi 0, %s47
      %s71 = sphi 0, %s73
      %s74 = sphi 0, %s71
      %s75 = sphi 0, %s74
      %s91 = sphi 0, %s75
      %s99 = sphi 0, %s101
      %s102 = sphi 0, %s99
      %s103 = sphi 0, %s102
      %s119 = sphi 0, %s103
      %s127 = sphi 0, %s129
      %s130 = sphi 0, %s127
      %s131 = sphi 0, %s130
      %s147 = sphi 0, %s131
    $region4: #{tpu_custom_call.1} parent=1 // loop_header_branch
      %15 = sbr.rel (%p13) target = $region8
    $region5: #{tpu_custom_call.1} parent=1 // loop_body
      %s17 = ssub.s32 %s12, 1
      %s18 = ssub.s32 %s12, 2
      %s28 = sadd.s32 1, %s21
      %p29 = scmp.ge.s32.totalorder %s28, 1
      %s30 = scalar_select %p29, 0, %s28
      %s31 = sadd.s32 1, %s20
      %s32 = scalar_select %p29, %s31, %s20
      %p33 = scmp.ge.s32.totalorder %s32, 1
      %s34 = scalar_select %p33, 0, %s32
      %s35 = sadd.s32 1, %s19
      %s36 = scalar_select %p33, %s35, %s19
      %p37 = scmp.ge.s32.totalorder %s36, 4
      %s38 = scalar_select %p37, 0, %s36
      %s39 = ssub.s32 %s19, %s38
      %s40 = ssub.s32 %s21, %s30
      %s41 = sor.u32 %s39, %s40
      %p42 = scmp.eq.s32.totalorder %s41, 0
      %s44 = sadd.s32 %s43, 1
      %s45 = scalar_select %p42, %s43, %s44
      %p48 = pneg %p42
      %p49 = scmp.eq.s32.totalorder %s12, 3
      %p50 = por %p48, %p49
      %p51 = scmp.ne.s32.totalorder %s43, %s46
      %p52 = scmp.eq.s32.totalorder %s12, 0
      %p53 = por %p51, %p52
      %p54 = scmp.ne.s32.totalorder %s43, %s46
      %p55 = scmp.eq.s32.totalorder %s17, 3
      %p56 = por %p54, %p55
      %p57 = scmp.ne.s32.totalorder %s46, %s47
      %p58 = scmp.eq.s32.totalorder %s17, 0
      %p59 = por %p57, %p58
      %p60 = scmp.ne.s32.totalorder %s46, %s47
      %p61 = scmp.eq.s32.totalorder %s18, 3
      %p62 = por %p60, %p61
      %p64 = scmp.ne.s32.totalorder %s47, %s63
      %p65 = scmp.eq.s32.totalorder %s18, 0
      %p66 = por %p64, %p65
      %s67 = ssub.s32 %s19, %s38
      %s68 = ssub.s32 %s20, %s34
      %s69 = sor.u32 %s67, %s68
      %p70 = scmp.eq.s32.totalorder %s69, 0
      %s72 = sadd.s32 %s71, 1
      %s73 = scalar_select %p70, %s71, %s72
      %p76 = pneg %p70
      %p77 = scmp.eq.s32.totalorder %s12, 3
      %p78 = por %p76, %p77
      %p79 = scmp.ne.s32.totalorder %s71, %s74
      %p80 = scmp.eq.s32.totalorder %s12, 0
      %p81 = por %p79, %p80
      %p82 = scmp.ne.s32.totalorder %s71, %s74
      %p83 = scmp.eq.s32.totalorder %s17, 3
      %p84 = por %p82, %p83
      %p85 = scmp.ne.s32.totalorder %s74, %s75
      %p86 = scmp.eq.s32.totalorder %s17, 0
      %p87 = por %p85, %p86
      %p88 = scmp.ne.s32.totalorder %s74, %s75
      %p89 = scmp.eq.s32.totalorder %s18, 3
      %p90 = por %p88, %p89
      %p92 = scmp.ne.s32.totalorder %s75, %s91
      %p93 = scmp.eq.s32.totalorder %s18, 0
      %p94 = por %p92, %p93
      %s95 = ssub.s32 %s19, %s38
      %s96 = ssub.s32 %s21, %s30
      %s97 = sor.u32 %s95, %s96
      %p98 = scmp.eq.s32.totalorder %s97, 0
      %s100 = sadd.s32 %s99, 1
      %s101 = scalar_select %p98, %s99, %s100
      %p104 = pneg %p98
      %p105 = scmp.eq.s32.totalorder %s12, 3
      %p106 = por %p104, %p105
      %p107 = scmp.ne.s32.totalorder %s99, %s102
      %p108 = scmp.eq.s32.totalorder %s12, 0
      %p109 = por %p107, %p108
      %p110 = scmp.ne.s32.totalorder %s99, %s102
      %p111 = scmp.eq.s32.totalorder %s17, 3
      %p112 = por %p110, %p111
      %p113 = scmp.ne.s32.totalorder %s102, %s103
      %p114 = scmp.eq.s32.totalorder %s17, 0
      %p115 = por %p113, %p114
      %p116 = scmp.ne.s32.totalorder %s102, %s103
      %p117 = scmp.eq.s32.totalorder %s18, 3
      %p118 = por %p116, %p117
      %p120 = scmp.ne.s32.totalorder %s103, %s119
      %p121 = scmp.eq.s32.totalorder %s18, 0
      %p122 = por %p120, %p121
      %s123 = ssub.s32 %s19, %s38
      %s124 = ssub.s32 %s20, %s34
      %s125 = sor.u32 %s123, %s124
      %p126 = scmp.eq.s32.totalorder %s125, 0
      %s128 = sadd.s32 %s127, 1
      %s129 = scalar_select %p126, %s127, %s128
      %p132 = pneg %p126
      %p133 = scmp.eq.s32.totalorder %s12, 3
      %p134 = por %p132, %p133
      %p135 = scmp.ne.s32.totalorder %s127, %s130
      %p136 = scmp.eq.s32.totalorder %s12, 0
      %p137 = por %p135, %p136
      %p138 = scmp.ne.s32.totalorder %s127, %s130
      %p139 = scmp.eq.s32.totalorder %s17, 3
      %p140 = por %p138, %p139
      %p141 = scmp.ne.s32.totalorder %s130, %s131
      %p142 = scmp.eq.s32.totalorder %s17, 0
      %p143 = por %p141, %p142
      %p144 = scmp.ne.s32.totalorder %s130, %s131
      %p145 = scmp.eq.s32.totalorder %s18, 3
      %p146 = por %p144, %p145
      %p148 = scmp.ne.s32.totalorder %s131, %s147
      %p149 = scmp.eq.s32.totalorder %s18, 0
      %p150 = por %p148, %p149
      %p151 = scmp.le.s32.totalorder 1, %s12
      %p152 = scmp.lt.s32.totalorder %s12, 5
      %p153 = pnand %p151, %p152
      %p154 = pneg %p153
      // Predicated region
      $region9: #{tpu_custom_call.1} parent=5 // pred_check
        _
      $region10: #{tpu_custom_call.1} parent=5 // pred_check_branch
        %156 = sbr.rel (%p153) target = $region12
      $region11: #{tpu_custom_call.1} parent=5 // pred_region
        %s157 = ssub.s32 %s12, 1
      $region12: #{tpu_custom_call.1} parent=5 // pred_fallthru
        _
      %p158 = scmp.lt.s32.totalorder %s12, 4
      // Predicated region
      $region13: #{tpu_custom_call.1} parent=5 // pred_check
        %p159 = pneg %p158
      $region14: #{tpu_custom_call.1} parent=5 // pred_check_branch
        %161 = sbr.rel (%p159) target = $region16
      $region15: #{tpu_custom_call.1} parent=5 // pred_region
        // Predicated region
        $region17: #{tpu_custom_call.1} parent=15 // pred_check
          %p162 = pneg %p53
        $region18: #{tpu_custom_call.1} parent=15 // pred_check_branch
          %164 = sbr.rel (%p162) target = $region20
        $region19: #{tpu_custom_call.1} parent=15 // pred_region
          %p165 = scmp.lt.s32.totalorder %s19, 3
          %s166 = scalar_select %p165, %s19, 3
          %p167 = scmp.lt.s32.totalorder %s21, 0
          %s168 = scalar_select %p167, %s21, 0
          %s169 = sadd.s32 %s168, %s166
          %s170 = scalar_lea.vmem %s0, %s169
        $region20: #{tpu_custom_call.1} parent=15 // pred_fallthru
          _
        // Predicated region
        $region21: #{tpu_custom_call.1} parent=15 // pred_check
          %p171 = pneg %p81
        $region22: #{tpu_custom_call.1} parent=15 // pred_check_branch
          %173 = sbr.rel (%p171) target = $region24
        $region23: #{tpu_custom_call.1} parent=15 // pred_region
          %p174 = scmp.lt.s32.totalorder %s19, 3
          %s175 = scalar_select %p174, %s19, 3
          %p176 = scmp.lt.s32.totalorder %s20, 0
          %s177 = scalar_select %p176, %s20, 0
          %s178 = sadd.s32 %s177, %s175
          %s179 = smul.addr %s178, 4
          %s180 = scalar_lea.vmem %s1, %s179
        $region24: #{tpu_custom_call.1} parent=15 // pred_fallthru
          _
        // Predicated region
        $region25: #{tpu_custom_call.1} parent=15 // pred_check
          %p181 = pneg %p109
        $region26: #{tpu_custom_call.1} parent=15 // pred_check_branch
          %183 = sbr.rel (%p181) target = $region28
        $region27: #{tpu_custom_call.1} parent=15 // pred_region
          %s184 = smul.u32 2, %s21
          %p185 = scmp.lt.s32.totalorder %s19, 3
          %s186 = scalar_select %p185, %s19, 3
          %p187 = scmp.lt.s32.totalorder %s184, 1
          %s188 = scalar_select %p187, %s184, 1
          %s189 = smul.addr %s186, 2
          %s190 = sadd.s32 %s188, %s189
          %s191 = smul.addr %s190, 8
          %s192 = scalar_lea.vmem %s2, %s191
          %s193 = smul.u32 2, %s21
        $region28: #{tpu_custom_call.1} parent=15 // pred_fallthru
          _
      $region16: #{tpu_custom_call.1} parent=5 // pred_fallthru
        _
      %p194 = scmp.le.s32.totalorder 1, %s12
      %p195 = scmp.lt.s32.totalorder %s12, 5
      %p196 = pnand %p194, %p195
      %p197 = pneg %p196
      // Predicated region
      $region29: #{tpu_custom_call.1} parent=5 // pred_check
        _
      $region30: #{tpu_custom_call.1} parent=5 // pred_check_branch
        %199 = sbr.rel (%p196) target = $region32
      $region31: #{tpu_custom_call.1} parent=5 // pred_region
        %s200 = ssub.s32 %s12, 1
        %p201 = scmp.lt.s32.totalorder %s22, 3
        %s202 = scalar_select %p201, %s22, 3
        %p203 = scmp.lt.s32.totalorder %s24, 0
        %s204 = scalar_select %p203, %s24, 0
        %s205 = sadd.s32 %s204, %s202
        %s206 = scalar_lea.vmem %s0, %s205
        %p207 = pneg %p59
        %p208 = pneg %p56
        %p209 = scmp.lt.s32.totalorder %s22, 3
        %s210 = scalar_select %p209, %s22, 3
        %p211 = scmp.lt.s32.totalorder %s23, 0
        %s212 = scalar_select %p211, %s23, 0
        %s213 = sadd.s32 %s212, %s210
        %s214 = smul.addr %s213, 4
        %s215 = scalar_lea.vmem %s1, %s214
        %p216 = pneg %p87
        %p217 = pneg %p84
        %s218 = smul.u32 2, %s24
        %p219 = scmp.lt.s32.totalorder %s22, 3
        %s220 = scalar_select %p219, %s22, 3
        %p221 = scmp.lt.s32.totalorder %s218, 1
        %s222 = scalar_select %p221, %s218, 1
        %s223 = smul.addr %s220, 2
        %s224 = sadd.s32 %s222, %s223
        %s225 = smul.addr %s224, 8
        %s226 = scalar_lea.vmem %s2, %s225
        %p227 = pneg %p115
        %p228 = pneg %p112
        %p229 = pneg %p143
        %p230 = pneg %p140
        %s231 = sand.u32 %s130, 1
        %s232 = scalar_lea.sflag [#allocation4], %s231
        %s233 = sand.u32 %s130, 1
        %s234 = scalar_lea.vmem [#allocation3], %s233
        %p235 = scmp.lt.s32.totalorder %s22, 3
        %s236 = scalar_select %p235, %s22, 3
        %p237 = scmp.lt.s32.totalorder %s24, 0
        %s238 = scalar_select %p237, %s24, 0
        %s239 = sadd.s32 %s238, %s236
        %s240 = scalar_lea.vmem %s0, %s239
        %p241 = scmp.lt.s32.totalorder %s22, 3
        %s242 = scalar_select %p241, %s22, 3
        %p243 = scmp.lt.s32.totalorder %s23, 0
        %s244 = scalar_select %p243, %s23, 0
        %s245 = sadd.s32 %s244, %s242
        %s246 = smul.addr %s245, 4
        %s247 = scalar_lea.vmem %s1, %s246
        %s248 = smul.u32 2, %s24
        %p249 = scmp.lt.s32.totalorder %s22, 3
        %s250 = scalar_select %p249, %s22, 3
        %p251 = scmp.lt.s32.totalorder %s248, 1
        %s252 = scalar_select %p251, %s248, 1
        %s253 = smul.addr %s250, 2
        %s254 = sadd.s32 %s252, %s253
        %s255 = smul.addr %s254, 8
        %s256 = scalar_lea.vmem %s2, %s255
        %s257 = smul.u32 2, %s24
        %p259 = scmp.eq.s32.totalorder %s24, 0
        // Predicated region
        $region33: #{tpu_custom_call.1} parent=31 // pred_check
          %p260 = pneg %p259
        $region34: #{tpu_custom_call.1} parent=31 // pred_check_branch
          %262 = sbr.rel (%p260) target = $region36
        $region35: #{tpu_custom_call.1} parent=31 // pred_region
          %vm263 = vcmask 123904
          %264 = vst.msk [vmem:[#allocation2] sm:$0x3] %vm263, 0.0
        $region36: #{tpu_custom_call.1} parent=31 // pred_fallthru
          _
        %s265 = smul.u32 %s23, 16
        %s266 = smul.u32 %s24, 16
        %v267 = vlaneseq
        %v268 = vand.u32 %v267, 127
        %v269 = vlaneseq
        %v270 = vshrl.u32 %v269, 7
        %v271 = vadd.s32 %v270, 8
        %v272 = vsub.s32 %v268, %v270
        %v273 = vsub.s32 %v268, %v271
        %s274 = ssub.s32 %s266, %s265
        %v275 = vstv %s274
        %vm276 = vcmp.lt.s32.totalorder %v272, %v275
        %vm277 = vcmp.lt.s32.totalorder %v273, %v275
        %v278 = vld [vmem:[%s247] sm:$0x1]
        %v279 = vld [vmem:[%s247 + $0x1] sm:$0x1]
        %v280 = vld [vmem:[%s247 + $0x2] sm:$0x1]
        %v281 = vld [vmem:[%s256] sm:$0xff]
        %v282 = vld [vmem:[%s256 + $0x8] sm:$0xff]
        %284 = vset.pattern.permute.xlu0 5
        %285 = vperm.xlu0 %284, %v281
        %v286 = vpop.permute.xlu0 %285
        %289 = vset.pattern.permute.xlu0 5
        %290 = vperm.xlu0 %289, %v282
        %v291 = vpop.permute.xlu0 %290
        %293 = vset.pattern.permute.xlu0 4
        %294 = vperm.xlu0 %293, %v281
        %v295 = vpop.permute.xlu0 %294
        %297 = vset.pattern.permute.xlu0 4
        %298 = vperm.xlu0 %297, %v282
        %v299 = vpop.permute.xlu0 %298
        %v301 = vsel %vm276, %v286, %v295
        %v302 = vsel %vm277, %v291, %v299
        %v303 = vlaneseq
        %v304 = vshrl.u32 %v303, 7
        %v305 = vsub.s32 0, %v304
        %v306 = vrot.slane %v280, %v305
        %v307 = vsub.f32 %v306, %v301
        %v308 = vsub.f32 %v306, %v302
        %v309 = vmul.f32 %v307, %v307
        %v310 = vmul.f32 %v308, %v308
        %v311 = vsub.f32 0.0, %v309
        %v312 = vsub.f32 0.0, %v310
        %v313 = vmul.f32 %v311, 1.442695
        %v314 = vpow.pop %v313
        %v315 = vmul.f32 %v312, 1.442695
        %v316 = vpow.pop %v315
        %317 = vset.pattern.permute.xlu0 2
        %318 = vperm.xlu0 %317, %v281
        %v319 = vpop.permute.xlu0 %318
        %321 = vset.pattern.permute.xlu0 2
        %322 = vperm.xlu0 %321, %v282
        %v323 = vpop.permute.xlu0 %322
        %325 = vset.pattern.permute.xlu0 0
        %326 = vperm.xlu0 %325, %v281
        %v327 = vpop.permute.xlu0 %326
        %329 = vset.pattern.permute.xlu0 0
        %330 = vperm.xlu0 %329, %v282
        %v331 = vpop.permute.xlu0 %330
        %v333 = vsel %vm276, %v319, %v327
        %v334 = vsel %vm277, %v323, %v331
        %v335 = vlaneseq
        %v336 = vshrl.u32 %v335, 7
        %v337 = vsub.s32 0, %v336
        %v338 = vrot.slane %v278, %v337
        %v339 = vmul.f32 %v338, %v333
        %v340 = vmul.f32 %v338, %v334
        %341 = vset.pattern.permute.xlu0 3
        %342 = vperm.xlu0 %341, %v281
        %v343 = vpop.permute.xlu0 %342
        %345 = vset.pattern.permute.xlu0 3
        %346 = vperm.xlu0 %345, %v282
        %v347 = vpop.permute.xlu0 %346
        %349 = vset.pattern.permute.xlu0 1
        %350 = vperm.xlu0 %349, %v281
        %v351 = vpop.permute.xlu0 %350
        %353 = vset.pattern.permute.xlu0 1
        %354 = vperm.xlu0 %353, %v282
        %v355 = vpop.permute.xlu0 %354
        %v357 = vsel %vm276, %v343, %v351
        %v358 = vsel %vm277, %v347, %v355
        %v359 = vlaneseq
        %v360 = vshrl.u32 %v359, 7
        %v361 = vsub.s32 0, %v360
        %v362 = vrot.slane %v279, %v361
        %v363 = vmul.f32 %v362, %v357
        %v364 = vmul.f32 %v362, %v358
        %v365 = vadd.f32 %v339, %v363
        %v366 = vadd.f32 %v340, %v364
        %v367 = vmul.f32 %v314, %v365
        %v368 = vmul.f32 %v316, %v366
        %v369 = vpack.c.bf16 %v368, %v367
        %v370 = vld [vmem:[#allocation2] sm:$0x3]
        %v371 = vld [vmem:[%s240] sm:$0x1]
        %vm372 = vcmask 130048
        %v374 = vsel %vm372, %v371, 0
        %376 = vmatprep.subr.bf16.mxu0 0
        %377 = vmatpush1.bf16.msra.mxu0 0
        %378 = vmatprep.subr.bf16.mxu0 0
        %379 = vmatpush1.bf16.msra.mxu0 0
        %380 = vmatprep.subr.bf16.mxu0 0
        %381 = vmatpush1.bf16.msra.mxu0 0
        %382 = vmatprep.subr.bf16.mxu0 0
        %383 = vmatpush1.bf16.msra.mxu0 0
        %384 = vmatprep.subr.bf16.mxu0 0
        %385 = vmatpush1.bf16.msra.mxu0 0
        %386 = vmatprep.subr.bf16.mxu0 0
        %387 = vmatpush1.bf16.msra.mxu0 0
        %388 = vmatprep.subr.bf16.mxu0 0
        %389 = vmatpush1.bf16.msra.mxu0 0
        %390 = vmatprep.subr.bf16.mxu0 0
        %391 = vmatpush1.bf16.msra.mxu0 %v369
        %392 = vmatprep.subr.bf16.mxu0 0
        %393 = vmatpush2.bf16.msra.mxu0 0
        %394 = vmatprep.subr.bf16.mxu0 0
        %395 = vmatpush2.bf16.msra.mxu0 0
        %396 = vmatprep.subr.bf16.mxu0 0
        %397 = vmatpush2.bf16.msra.mxu0 0
        %398 = vmatprep.subr.bf16.mxu0 0
        %399 = vmatpush2.bf16.msra.mxu0 0
        %400 = vmatprep.subr.bf16.mxu0 0
        %401 = vmatpush2.bf16.msra.mxu0 0
        %402 = vmatprep.subr.bf16.mxu0 0
        %403 = vmatpush2.bf16.msra.mxu0 0
        %404 = vmatprep.subr.bf16.mxu0 0
        %405 = vmatpush2.bf16.msra.mxu0 0
        %406 = vmatprep.subr.bf16.mxu0 0
        %407 = vmatpush2.bf16.msra.mxu0 0
        %408 = vmatprep.mubr.bf16.mxu0 0
        %409 = vmatmul.mubr.bf16.gmra.mxu0 %v374
        %v410 = vpop.f32.mrf.mxu0
        %v411 = vadd.f32 0.0, %v410
        %v412 = vpop.f32.mrf.mxu0
        %v413 = vpop.f32.mrf.mxu0
        %v414 = vpop.f32.mrf.mxu0
        %415 = vdwg.mxu0
        %v416 = vadd.f32 %v370, %v411
        %vm417 = vcmask 123904
        %418 = vst.msk [vmem:[#allocation2] sm:$0x3] %vm417, %v416
        // Predicated region
        $region37: #{tpu_custom_call.1} parent=31 // pred_check
          %p419 = pneg %p259
        $region38: #{tpu_custom_call.1} parent=31 // pred_check_branch
          %421 = sbr.rel (%p419) target = $region40
        $region39: #{tpu_custom_call.1} parent=31 // pred_region
          %v422 = vld [vmem:[#allocation2] sm:$0x3]
          %v423 = vpack.c.bf16 %v422, %v422
          %vm424 = vcmask 122880
          %425 = vst.msk [vmem:[%s234] sm:$0x1] %vm424, %v423
        $region40: #{tpu_custom_call.1} parent=31 // pred_fallthru
          _
        %s426 = sand.u32 %s130, 1
        %s427 = scalar_lea.sflag [#allocation4], %s426
        %s428 = sand.u32 %s130, 1
        %s429 = scalar_lea.vmem [#allocation3], %s428
        // Predicated region
        $region41: #{tpu_custom_call.1} parent=31 // pred_check
          %p430 = pneg %p140
        $region42: #{tpu_custom_call.1} parent=31 // pred_check_branch
          %432 = sbr.rel (%p430) target = $region44
        $region43: #{tpu_custom_call.1} parent=31 // pred_region
          %s434 = ssub.s32 16, 16
          %435 = vsyncadd %s427, %s434
          %s436 = sadd.s32 %s23, %s22
          %s437 = smul.addr %s436, 16
          %s438 = scalar_lea.hbm %s3, %s437
          %s440 = sshll.u32 %s429, 4
          %s441 = int_to_ptr.vmem [resolvable:$true] %s440
          %443 = dma.vmem_to_hbm [thread:$0]  %s441, 16, %s438, %s427
        $region44: #{tpu_custom_call.1} parent=31 // pred_fallthru
          _
      $region32: #{tpu_custom_call.1} parent=5 // pred_fallthru
        _
      %p444 = scmp.le.s32.totalorder 2, %s12
      // Predicated region
      $region45: #{tpu_custom_call.1} parent=5 // pred_check
        %p445 = pneg %p444
      $region46: #{tpu_custom_call.1} parent=5 // pred_check_branch
        %447 = sbr.rel (%p445) target = $region48
      $region47: #{tpu_custom_call.1} parent=5 // pred_region
        %s448 = ssub.s32 %s12, 2
        // Predicated region
        $region49: #{tpu_custom_call.1} parent=47 // pred_check
          %p449 = pneg %p146
        $region50: #{tpu_custom_call.1} parent=47 // pred_check_branch
          %451 = sbr.rel (%p449) target = $region52
        $region51: #{tpu_custom_call.1} parent=47 // pred_region
          %s452 = sand.u32 %s131, 1
          %s453 = scalar_lea.sflag [#allocation4], %s452
          %s454 = sand.u32 %s131, 1
          %s455 = scalar_lea.vmem [#allocation3], %s454
          %456 = dma.done %s453, 16
        $region52: #{tpu_custom_call.1} parent=47 // pred_fallthru
          _
      $region48: #{tpu_custom_call.1} parent=5 // pred_fallthru
        _
    $region6: #{tpu_custom_call.1} parent=1 // loop_footer
      %s16 = sadd.s32 1, %s12
    $region7: #{tpu_custom_call.1} parent=1 // loop_footer_branch
      %11 = sbr.rel target = $region3
    $region8: #{tpu_custom_call.1} parent=1 // loop_exit
      _
    %457 = vsyncpa [#allocation4], 1
    %s458 = scalar_lea.sflag [#allocation4], 1
    %459 = vsyncpa %s458, 1

</llo_original>
